<compile_context>
chip_gen: v7x
topology: tpu7x:2x2x1
jax: 0.10.0
libtpu: 0.0.40
codegen_flags: <defaults>
</compile_context>

<pallas_src>
import math
from functools import partial

import jax
import jax.numpy as jnp
from jax.experimental import pallas as pl
from jax.experimental.pallas import tpu as pltpu


def _round_up(x, m):
    return ((x + m - 1) // m) * m


def _fused_mlp_kernel(*refs, num_layers):
    """Whole MLP in one grid step.

    refs = (x_ref, w0_ref, b0_ref, w1_ref, b1_ref, ..., o_ref).
    bf16 matmuls on the MXU (f32 accumulation), bias+ReLU in f32 on the VPU;
    intermediate activations never leave on-chip memory.
    """
    x_ref = refs[0]
    o_ref = refs[-1]
    h = x_ref[...].astype(jnp.bfloat16)
    for l in range(num_layers):
        w = refs[1 + 2 * l][...]                        # bf16 (K_l, N_l)
        b = refs[2 + 2 * l][...].astype(jnp.float32)    # (1, N_l) broadcasts
        acc = jnp.dot(h, w, preferred_element_type=jnp.float32)
        h_f32 = jnp.maximum(acc + b, 0.0)
        h = h_f32.astype(jnp.bfloat16) if l + 1 < num_layers else h_f32
    o_ref[...] = h.astype(o_ref.dtype)


def init_dense_params(key, in_features, layer_sizes, dtype=jnp.float32):
    """f32 master params mimicking torch.nn.Linear defaults (U(+-1/sqrt(fan_in))).

    Weights are returned already transposed to (in_features, out_features).
    """
    params = []
    fan_in = in_features
    for out_features in layer_sizes:
        key, kw, kb = jax.random.split(key, 3)
        bound = 1.0 / math.sqrt(fan_in)
        w = jax.random.uniform(kw, (fan_in, out_features), dtype, -bound, bound)
        b = jax.random.uniform(kb, (1, out_features), dtype, -bound, bound)
        params.append((w, b))
        fan_in = out_features
    return params


def pad_dense_params(params, in_features, dtype=jnp.bfloat16):
    """One-time prep: pad every feature dim to a multiple of 128 (lane-dense
    loads/matmuls/stores) and store W, b in bf16 (MXU-native, half the bytes).

    Zero padding is exact for Linear+ReLU: padded weight rows/cols and bias
    lanes are zero and relu(0) == 0, so padded activation columns stay zero.
    """
    padded = []
    k = in_features
    for w, b in params:
        kin, nout = w.shape
        assert kin == k
        kp = _round_up(max(kin, 128), 128)
        npad = _round_up(max(nout, 128), 128)
        wp = jnp.zeros((kp, npad), dtype).at[:kin, :nout].set(w.astype(dtype))
        bp = jnp.zeros((1, npad), dtype).at[:, :nout].set(b.astype(dtype))
        padded.append((wp, bp))
        k = nout
    return padded


def _pick_tm(M, Kp, Np, max_width, weight_bytes, in_bytes, out_bytes):
    """Largest batch tile in {512,256,128} s.t. resident (single-buffered)
    weights + double-buffered x/out tiles + f32 intermediates fit a ~48 MiB
    budget (safe under v7x's 64 MiB VMEM).  Small batches use one tile."""
    m8 = _round_up(max(M, 8), 8)
    if m8 <= 128:
        return m8
    budget = 48 << 20
    m_cap = _round_up(M, 128)
    for tm in (512, 256, 128):
        if tm > m_cap:
            continue
        act = 2 * tm * Kp * in_bytes + 2 * tm * Np * out_bytes + 4 * tm * max_width * 4
        if weight_bytes + act <= budget:
            return tm
    return 128


@partial(jax.jit, static_argnames=("out_features",))
def dense_forward(x, padded_params, *, out_features):
    """Forward pass of the Dense module via one fused pallas_call."""
    M, K = x.shape
    num_layers = len(padded_params)
    Kp = padded_params[0][0].shape[0]
    Np = padded_params[-1][0].shape[1]
    max_width = max(w.shape[1] for w, _ in padded_params)
    in_bytes = x.dtype.itemsize
    out_bytes = x.dtype.itemsize
    weight_bytes = sum(w.size * w.dtype.itemsize + b.size * b.dtype.itemsize
                       for w, b in padded_params)

    tm = _pick_tm(M, Kp, Np, max_width, weight_bytes, in_bytes, out_bytes)
    Mp = _round_up(max(M, tm), tm)

    xp = x if (Mp == M and Kp == K) else jnp.pad(x, ((0, Mp - M), (0, Kp - K)))

    flat_wb = []
    in_specs = [pl.BlockSpec((tm, Kp), lambda i: (i, 0))]
    for w, b in padded_params:
        kp, npad = w.shape
        # Constant index_map: fetched into VMEM once, reused every grid step.
        # Buffered(1): double-buffering a constant block only wastes VMEM.
        in_specs.append(pl.BlockSpec((kp, npad), lambda i: (0, 0),
                                     pipeline_mode=pl.Buffered(1)))
        in_specs.append(pl.BlockSpec((1, npad), lambda i: (0, 0),
                                     pipeline_mode=pl.Buffered(1)))
        flat_wb += [w, b]

    # VMEM budget: single-buffered weights + double-buffered x/out tiles +
    # f32 intermediates, 1.5x headroom, capped at 64 MiB (v7x physical VMEM).
    act_bytes = (2 * tm * Kp * in_bytes + 2 * tm * Np * out_bytes
                 + 4 * tm * max_width * 4)
    vmem_limit = int(min(max(int((weight_bytes + act_bytes) * 1.5) + (2 << 20),
                             8 << 20), 64 << 20))

    flops = sum(2 * Mp * w.shape[0] * w.shape[1] for w, _ in padded_params)
    bytes_accessed = int(xp.size * in_bytes + weight_bytes + Mp * Np * out_bytes)

    # TODO(synk): if the padded weight stack outgrows VMEM (v7x: ~48 MiB),
    # switch weights to memory_space=pl.ANY and manually double-buffer
    # per-layer weight DMAs (make_async_copy), prefetching W[l+1] while
    # computing layer l; for tiny batches on v7x consider VMEM_SHARED weights
    # so both TensorCores do not each pull a full weight copy from HBM.
    y = pl.pallas_call(
        partial(_fused_mlp_kernel, num_layers=num_layers),
        out_shape=jax.ShapeDtypeStruct((Mp, Np), x.dtype),
        grid=(Mp // tm,),
        in_specs=in_specs,
        out_specs=pl.BlockSpec((tm, Np), lambda i: (i, 0)),
        compiler_params=pltpu.CompilerParams(
            dimension_semantics=("parallel",),   # batch tiles shard across TCs
            vmem_limit_bytes=vmem_limit),
        cost_estimate=pl.CostEstimate(flops=flops, transcendentals=0,
                                      bytes_accessed=bytes_accessed),
    )(xp, *flat_wb)

    return y[:M, :out_features]


def dense_forward_ref(x, params):
    """Pure-JAX f32 reference (unpadded) for correctness checking."""
    out = x
    for w, b in params:
        out = jnp.maximum(out @ w + b, 0.0)
    return out


if __name__ == "__main__":
    key = jax.random.PRNGKey(0)
    k_x, k_p, k_x2 = jax.random.split(key, 3)

    batch = 8
    in_features = 32
    layer_sizes = (64, 48, 32)   # the `params` list of the PyTorch module

    x = jax.random.normal(k_x, (batch, in_features), dtype=jnp.float32)
    params = init_dense_params(k_p, in_features, layer_sizes)
    padded_params = pad_dense_params(params, in_features)   # bf16, 128-padded

    y = dense_forward(x, padded_params, out_features=layer_sizes[-1])
    y = jax.block_until_ready(y)
    y_ref = dense_forward_ref(x, params)
    assert y.shape == (batch, layer_sizes[-1])
    # bf16 matmul with f32 accumulation: loosened tolerances vs the f32 master.
    assert jnp.allclose(y, y_ref, atol=5e-2, rtol=5e-2)

    # Larger batch exercises the M-padding + multi-tile ("parallel") grid path.
    x2 = jax.random.normal(k_x2, (260, in_features), dtype=jnp.float32)
    y2 = jax.block_until_ready(
        dense_forward(x2, padded_params, out_features=layer_sizes[-1]))
    y2_ref = dense_forward_ref(x2, params)
    assert y2.shape == (260, layer_sizes[-1])
    assert jnp.allclose(y2, y2_ref, atol=5e-2, rtol=5e-2)

    print("KERNEL_OK")
</pallas_src>

<mosaic_0001>
module attributes {stable_mosaic.version = 11 : i64} {
  func.func @_fused_mlp_kernel(%arg0: i32, %arg1: memref<8x128xf32, #tpu.memory_space<vmem>>, %arg2: memref<128x128xbf16, #tpu.memory_space<vmem>>, %arg3: memref<1x128xbf16, #tpu.memory_space<vmem>>, %arg4: memref<128x128xbf16, #tpu.memory_space<vmem>>, %arg5: memref<1x128xbf16, #tpu.memory_space<vmem>>, %arg6: memref<128x128xbf16, #tpu.memory_space<vmem>>, %arg7: memref<1x128xbf16, #tpu.memory_space<vmem>>, %arg8: memref<8x128xf32, #tpu.memory_space<vmem>>) attributes {dimension_semantics = [#tpu.dimension_semantics<parallel>], iteration_bounds = array<i64: 1>, scalar_prefetch = 0 : i64, scratch_operands = 0 : i64, tpu.core_type = #tpu.core_type<tc>, window_params = [{transform_indices = @transform_0, window_bounds = array<i64: 8, 128>}, {pipeline_mode = #tpu.pipeline_mode<synchronous>, transform_indices = @transform_1, window_bounds = array<i64: 128, 128>}, {pipeline_mode = #tpu.pipeline_mode<synchronous>, transform_indices = @transform_2, window_bounds = array<i64: 1, 128>}, {pipeline_mode = #tpu.pipeline_mode<synchronous>, transform_indices = @transform_3, window_bounds = array<i64: 128, 128>}, {pipeline_mode = #tpu.pipeline_mode<synchronous>, transform_indices = @transform_4, window_bounds = array<i64: 1, 128>}, {pipeline_mode = #tpu.pipeline_mode<synchronous>, transform_indices = @transform_5, window_bounds = array<i64: 128, 128>}, {pipeline_mode = #tpu.pipeline_mode<synchronous>, transform_indices = @transform_6, window_bounds = array<i64: 1, 128>}, {transform_indices = @transform_7, window_bounds = array<i64: 8, 128>}]} {
    %c0 = arith.constant 0 : index
    %c0_0 = arith.constant 0 : index
    %0 = vector.load %arg1[%c0, %c0_0] : memref<8x128xf32, #tpu.memory_space<vmem>>, vector<8x128xf32>
    %1 = arith.truncf %0 : vector<8x128xf32> to vector<8x128xbf16>
    %c0_1 = arith.constant 0 : index
    %c0_2 = arith.constant 0 : index
    %2 = vector.load %arg2[%c0_1, %c0_2] : memref<128x128xbf16, #tpu.memory_space<vmem>>, vector<128x128xbf16>
    %c0_3 = arith.constant 0 : index
    %c0_4 = arith.constant 0 : index
    %3 = vector.load %arg3[%c0_3, %c0_4] : memref<1x128xbf16, #tpu.memory_space<vmem>>, vector<1x128xbf16>
    %4 = arith.extf %3 : vector<1x128xbf16> to vector<1x128xf32>
    %cst = arith.constant dense<0.000000e+00> : vector<8x128xf32>
    %5 = tpu.matmul %1, %2, %cst {dimension_numbers = #tpu.dot_dimension_numbers<[1], [0], [0], [1], [0, 0, 1, 1], [], []>} : vector<8x128xbf16>, vector<128x128xbf16>, vector<8x128xf32> -> vector<8x128xf32>
    %6 = vector.broadcast %4 : vector<1x128xf32> to vector<8x128xf32>
    %7 = arith.addf %5, %6 : vector<8x128xf32>
    %cst_5 = arith.constant 0.000000e+00 : f32
    %8 = vector.broadcast %cst_5 : f32 to vector<8x128xf32>
    %9 = arith.maximumf %7, %8 : vector<8x128xf32>
    %10 = arith.truncf %9 : vector<8x128xf32> to vector<8x128xbf16>
    %c0_6 = arith.constant 0 : index
    %c0_7 = arith.constant 0 : index
    %11 = vector.load %arg4[%c0_6, %c0_7] : memref<128x128xbf16, #tpu.memory_space<vmem>>, vector<128x128xbf16>
    %c0_8 = arith.constant 0 : index
    %c0_9 = arith.constant 0 : index
    %12 = vector.load %arg5[%c0_8, %c0_9] : memref<1x128xbf16, #tpu.memory_space<vmem>>, vector<1x128xbf16>
    %13 = arith.extf %12 : vector<1x128xbf16> to vector<1x128xf32>
    %cst_10 = arith.constant dense<0.000000e+00> : vector<8x128xf32>
    %14 = tpu.matmul %10, %11, %cst_10 {dimension_numbers = #tpu.dot_dimension_numbers<[1], [0], [0], [1], [0, 0, 1, 1], [], []>} : vector<8x128xbf16>, vector<128x128xbf16>, vector<8x128xf32> -> vector<8x128xf32>
    %15 = vector.broadcast %13 : vector<1x128xf32> to vector<8x128xf32>
    %16 = arith.addf %14, %15 : vector<8x128xf32>
    %cst_11 = arith.constant 0.000000e+00 : f32
    %17 = vector.broadcast %cst_11 : f32 to vector<8x128xf32>
    %18 = arith.maximumf %16, %17 : vector<8x128xf32>
    %19 = arith.truncf %18 : vector<8x128xf32> to vector<8x128xbf16>
    %c0_12 = arith.constant 0 : index
    %c0_13 = arith.constant 0 : index
    %20 = vector.load %arg6[%c0_12, %c0_13] : memref<128x128xbf16, #tpu.memory_space<vmem>>, vector<128x128xbf16>
    %c0_14 = arith.constant 0 : index
    %c0_15 = arith.constant 0 : index
    %21 = vector.load %arg7[%c0_14, %c0_15] : memref<1x128xbf16, #tpu.memory_space<vmem>>, vector<1x128xbf16>
    %22 = arith.extf %21 : vector<1x128xbf16> to vector<1x128xf32>
    %cst_16 = arith.constant dense<0.000000e+00> : vector<8x128xf32>
    %23 = tpu.matmul %19, %20, %cst_16 {dimension_numbers = #tpu.dot_dimension_numbers<[1], [0], [0], [1], [0, 0, 1, 1], [], []>} : vector<8x128xbf16>, vector<128x128xbf16>, vector<8x128xf32> -> vector<8x128xf32>
    %24 = vector.broadcast %22 : vector<1x128xf32> to vector<8x128xf32>
    %25 = arith.addf %23, %24 : vector<8x128xf32>
    %cst_17 = arith.constant 0.000000e+00 : f32
    %26 = vector.broadcast %cst_17 : f32 to vector<8x128xf32>
    %27 = arith.maximumf %25, %26 : vector<8x128xf32>
    %c0_18 = arith.constant 0 : index
    %c0_19 = arith.constant 0 : index
    %28 = vector.load %arg8[%c0_18, %c0_19] : memref<8x128xf32, #tpu.memory_space<vmem>>, vector<8x128xf32>
    tpu.vector_store %arg8[%c0_18, %c0_19], %27 {strides = array<i32>} : memref<8x128xf32, #tpu.memory_space<vmem>>, vector<8x128xf32>,
    return
  }
  func.func @transform_0(%arg0: i32) -> (i32, i32) {
    %c0_i32 = arith.constant 0 : i32
    %c0_i32_0 = arith.constant 0 : i32
    return %arg0, %c0_i32 : i32, i32
  }
  func.func @transform_1(%arg0: i32) -> (i32, i32) {
    %c0_i32 = arith.constant 0 : i32
    %c0_i32_0 = arith.constant 0 : i32
    %c0_i32_1 = arith.constant 0 : i32
    return %c0_i32, %c0_i32_0 : i32, i32
  }
  func.func @transform_2(%arg0: i32) -> (i32, i32) {
    %c0_i32 = arith.constant 0 : i32
    %c0_i32_0 = arith.constant 0 : i32
    %c0_i32_1 = arith.constant 0 : i32
    return %c0_i32, %c0_i32_0 : i32, i32
  }
  func.func @transform_3(%arg0: i32) -> (i32, i32) {
    %c0_i32 = arith.constant 0 : i32
    %c0_i32_0 = arith.constant 0 : i32
    %c0_i32_1 = arith.constant 0 : i32
    return %c0_i32, %c0_i32_0 : i32, i32
  }
  func.func @transform_4(%arg0: i32) -> (i32, i32) {
    %c0_i32 = arith.constant 0 : i32
    %c0_i32_0 = arith.constant 0 : i32
    %c0_i32_1 = arith.constant 0 : i32
    return %c0_i32, %c0_i32_0 : i32, i32
  }
  func.func @transform_5(%arg0: i32) -> (i32, i32) {
    %c0_i32 = arith.constant 0 : i32
    %c0_i32_0 = arith.constant 0 : i32
    %c0_i32_1 = arith.constant 0 : i32
    return %c0_i32, %c0_i32_0 : i32, i32
  }
  func.func @transform_6(%arg0: i32) -> (i32, i32) {
    %c0_i32 = arith.constant 0 : i32
    %c0_i32_0 = arith.constant 0 : i32
    %c0_i32_1 = arith.constant 0 : i32
    return %c0_i32, %c0_i32_0 : i32, i32
  }
  func.func @transform_7(%arg0: i32) -> (i32, i32) {
    %c0_i32 = arith.constant 0 : i32
    %c0_i32_0 = arith.constant 0 : i32
    return %arg0, %c0_i32 : i32, i32
  }
}

</mosaic_0001>

<llo_original>
// kernel: dense_forward.1
$region0: #{dense_forward.1}
  #allocation0 [shape = 'u32[]', space=smem, size = 0x4, offset = 0x4, fixed_abs, tag = 'smem constant byte address 0x4 - core index']
  #allocation1 [shape = 'u32[144,128]{1,0:T(1,128)}', space=vmem, size = 0x12000, scoped, tag = 'internal scratch']
  %s0 = inlined_call_operand.vmem [shape: f32[8,128], index: 0, kind: input, shape index: {}]
  %s1 = inlined_call_operand.hbm [shape: bf16[128,128], index: 1, kind: input, shape index: {}]
  %s2 = inlined_call_operand.vmem [shape: bf16[1,128], index: 2, kind: input, shape index: {}]
  %s3 = inlined_call_operand.hbm [shape: bf16[128,128], index: 3, kind: input, shape index: {}]
  %s4 = inlined_call_operand.vmem [shape: bf16[1,128], index: 4, kind: input, shape index: {}]
  %s5 = inlined_call_operand.hbm [shape: bf16[128,128], index: 5, kind: input, shape index: {}]
  %s6 = inlined_call_operand.vmem [shape: bf16[1,128], index: 6, kind: input, shape index: {}]
  %s7 = inlined_call_operand.hbm [shape: f32[8,128], index: 7, kind: output, shape index: {}]
  %s8 = sld [smem:[#allocation0]]
  $region50: #{dense_forward.1} parent=0
    _
  %s10 = ssub.s32 1, %s8
  %s11 = scalar_select 0, %s10, %s8
  $region1: #{dense_forward.1} parent=0
    #allocation2 [shape = 'u8[32768]{0}', space=vmem, size = 0x8000, scoped, tag = 'input window, operand 1, single buffered']
    #allocation3 [shape = 's32[1]{0}', space=sflag, size = 0x4, scoped, tag = 'scoped memory for dense_forward.1']
    #allocation4 [shape = 's32[1]{0}', space=sflag, size = 0x4, scoped, tag = 'scoped memory for dense_forward.1']
    #allocation5 [shape = 'u8[32768]{0}', space=vmem, size = 0x8000, scoped, tag = 'input window, operand 3, single buffered']
    #allocation6 [shape = 's32[1]{0}', space=sflag, size = 0x4, scoped, tag = 'scoped memory for dense_forward.1']
    #allocation7 [shape = 'u8[32768]{0}', space=vmem, size = 0x8000, scoped, tag = 'input window, operand 5, single buffered']
    #allocation8 [shape = 'u8[4096]{0}', space=vmem, size = 0x1000, scoped, tag = 'output window, operand 0, single buffered']
    %12 = vsyncpa [#allocation3], 0
    %13 = vsyncpa [#allocation6], 0
    %14 = vsyncpa [#allocation4], 0
    // Predicated region
    $region2: #{dense_forward.1} parent=1 // pred_check
      _
    $region3: #{dense_forward.1} parent=1 // pred_check_branch
      %16 = sbr.rel (0) target = $region5
    $region4: #{dense_forward.1} parent=1 // pred_region
      _
    $region5: #{dense_forward.1} parent=1 // pred_fallthru
      _
    // Predicated region
    $region6: #{dense_forward.1} parent=1 // pred_check
      _
    $region7: #{dense_forward.1} parent=1 // pred_check_branch
      %18 = sbr.rel (0) target = $region9
    $region8: #{dense_forward.1} parent=1 // pred_region
      %s20 = ssub.s32 1024, 1024
      %21 = vsyncadd [#allocation3], %s20
      %s22 = sshll.u32 [#allocation2], 4
      %s23 = int_to_ptr.vmem [resolvable:$true] %s22
      %28 = dma.hbm_to_vmem [thread:$0]  %s1, 1024, %s23, [#allocation3], 64, 64, 4
    $region9: #{dense_forward.1} parent=1 // pred_fallthru
      _
    // Predicated region
    $region10: #{dense_forward.1} parent=1 // pred_check
      _
    $region11: #{dense_forward.1} parent=1 // pred_check_branch
      %30 = sbr.rel (0) target = $region13
    $region12: #{dense_forward.1} parent=1 // pred_region
      _
    $region13: #{dense_forward.1} parent=1 // pred_fallthru
      _
    // Predicated region
    $region14: #{dense_forward.1} parent=1 // pred_check
      _
    $region15: #{dense_forward.1} parent=1 // pred_check_branch
      %32 = sbr.rel (0) target = $region17
    $region16: #{dense_forward.1} parent=1 // pred_region
      %s34 = ssub.s32 1024, 1024
      %35 = vsyncadd [#allocation6], %s34
      %s36 = sshll.u32 [#allocation5], 4
      %s37 = int_to_ptr.vmem [resolvable:$true] %s36
      %42 = dma.hbm_to_vmem [thread:$0]  %s3, 1024, %s37, [#allocation6], 64, 64, 4
    $region17: #{dense_forward.1} parent=1 // pred_fallthru
      _
    // Predicated region
    $region18: #{dense_forward.1} parent=1 // pred_check
      _
    $region19: #{dense_forward.1} parent=1 // pred_check_branch
      %44 = sbr.rel (0) target = $region21
    $region20: #{dense_forward.1} parent=1 // pred_region
      _
    $region21: #{dense_forward.1} parent=1 // pred_fallthru
      _
    // Predicated region
    $region22: #{dense_forward.1} parent=1 // pred_check
      _
    $region23: #{dense_forward.1} parent=1 // pred_check_branch
      %46 = sbr.rel (0) target = $region25
    $region24: #{dense_forward.1} parent=1 // pred_region
      %s48 = ssub.s32 1024, 1024
      %49 = vsyncadd [#allocation6], %s48
      %s50 = sshll.u32 [#allocation7], 4
      %s51 = int_to_ptr.vmem [resolvable:$true] %s50
      %56 = dma.hbm_to_vmem [thread:$0]  %s5, 1024, %s51, [#allocation6], 64, 64, 4
    $region25: #{dense_forward.1} parent=1 // pred_fallthru
      _
    // Predicated region
    $region26: #{dense_forward.1} parent=1 // pred_check
      _
    $region27: #{dense_forward.1} parent=1 // pred_check_branch
      %58 = sbr.rel (0) target = $region29
    $region28: #{dense_forward.1} parent=1 // pred_region
      _
    $region29: #{dense_forward.1} parent=1 // pred_fallthru
      _
    // Predicated region
    $region30: #{dense_forward.1} parent=1 // pred_check
      _
    $region31: #{dense_forward.1} parent=1 // pred_check_branch
      %60 = sbr.rel (0) target = $region33
    $region32: #{dense_forward.1} parent=1 // pred_region
      %61 = dma.done [#allocation3], 1024
    $region33: #{dense_forward.1} parent=1 // pred_fallthru
      _
    // Predicated region
    $region34: #{dense_forward.1} parent=1 // pred_check
      _
    $region35: #{dense_forward.1} parent=1 // pred_check_branch
      %63 = sbr.rel (0) target = $region37
    $region36: #{dense_forward.1} parent=1 // pred_region
      %64 = dma.done [#allocation6], 1024
    $region37: #{dense_forward.1} parent=1 // pred_fallthru
      _
    // Predicated region
    $region38: #{dense_forward.1} parent=1 // pred_check
      _
    $region39: #{dense_forward.1} parent=1 // pred_check_branch
      %66 = sbr.rel (0) target = $region41
    $region40: #{dense_forward.1} parent=1 // pred_region
      %67 = dma.done [#allocation6], 1024
    $region41: #{dense_forward.1} parent=1 // pred_fallthru
      _
    %v69 = vld [vmem:[%s0] sm:$0xff]
    %v70 = vpack.c.bf16 %v69, %v69
    %v71 = vld [vmem:[#allocation2] sm:$0xf]
    %v72 = vld [vmem:[#allocation2 + $0x4] sm:$0xf]
    %v73 = vld [vmem:[#allocation2 + $0x8] sm:$0xf]
    %v74 = vld [vmem:[#allocation2 + $0xc] sm:$0xf]
    %v75 = vld [vmem:[#allocation2 + $0x10] sm:$0xf]
    %v76 = vld [vmem:[#allocation2 + $0x14] sm:$0xf]
    %v77 = vld [vmem:[#allocation2 + $0x18] sm:$0xf]
    %v78 = vld [vmem:[#allocation2 + $0x1c] sm:$0xf]
    %v79 = vld [vmem:[#allocation2 + $0x20] sm:$0xf]
    %v80 = vld [vmem:[#allocation2 + $0x24] sm:$0xf]
    %v81 = vld [vmem:[#allocation2 + $0x28] sm:$0xf]
    %v82 = vld [vmem:[#allocation2 + $0x2c] sm:$0xf]
    %v83 = vld [vmem:[#allocation2 + $0x30] sm:$0xf]
    %v84 = vld [vmem:[#allocation2 + $0x34] sm:$0xf]
    %v85 = vld [vmem:[#allocation2 + $0x38] sm:$0xf]
    %v86 = vld [vmem:[#allocation2 + $0x3c] sm:$0xf]
    %v87 = vld [vmem:[%s2] sm:$0x1]
    %v88 = vunpack.c.l.bf16 %v87
    %v89 = vlaneseq
    %v90 = vshrl.u32 %v89, 7
    %v91 = vsub.s32 0, %v90
    %v92 = vrot.slane %v88, %v91
    %v109 = vunpack.c.l.b16 %v71
    %v110 = vunpack.c.l.b16 %v72
    %v111 = vunpack.c.l.b16 %v73
    %v112 = vunpack.c.l.b16 %v74
    %v113 = vunpack.c.l.b16 %v75
    %v114 = vunpack.c.l.b16 %v76
    %v115 = vunpack.c.l.b16 %v77
    %v116 = vunpack.c.l.b16 %v78
    %v117 = vunpack.c.l.b16 %v79
    %v118 = vunpack.c.l.b16 %v80
    %v119 = vunpack.c.l.b16 %v81
    %v120 = vunpack.c.l.b16 %v82
    %v121 = vunpack.c.l.b16 %v83
    %v122 = vunpack.c.l.b16 %v84
    %v123 = vunpack.c.l.b16 %v85
    %v124 = vunpack.c.l.b16 %v86
    %v125 = vpack.c.b16 %v110, %v109
    %v126 = vpack.c.b16 %v112, %v111
    %v127 = vpack.c.b16 %v114, %v113
    %v128 = vpack.c.b16 %v116, %v115
    %v129 = vpack.c.b16 %v118, %v117
    %v130 = vpack.c.b16 %v120, %v119
    %v131 = vpack.c.b16 %v122, %v121
    %v132 = vpack.c.b16 %v124, %v123
    %141 = vmatprep.subr.bf16.mxu0 0
    %142 = vmatpush1.bf16.msra.mxu0 %v125
    %143 = vmatprep.subr.bf16.mxu0 0
    %144 = vmatpush1.bf16.msra.mxu0 %v126
    %145 = vmatprep.subr.bf16.mxu0 0
    %146 = vmatpush1.bf16.msra.mxu0 %v127
    %147 = vmatprep.subr.bf16.mxu0 0
    %148 = vmatpush1.bf16.msra.mxu0 %v128
    %149 = vmatprep.subr.bf16.mxu0 0
    %150 = vmatpush1.bf16.msra.mxu0 %v129
    %151 = vmatprep.subr.bf16.mxu0 0
    %152 = vmatpush1.bf16.msra.mxu0 %v130
    %153 = vmatprep.subr.bf16.mxu0 0
    %154 = vmatpush1.bf16.msra.mxu0 %v131
    %155 = vmatprep.subr.bf16.mxu0 0
    %156 = vmatpush1.bf16.msra.mxu0 %v132
    %157 = vmatprep.subr.bf16.mxu0 0
    %158 = vmatpush1.bf16.msra.mxu0 0
    %159 = vmatprep.subr.bf16.mxu0 0
    %160 = vmatpush1.bf16.msra.mxu0 0
    %161 = vmatprep.subr.bf16.mxu0 0
    %162 = vmatpush1.bf16.msra.mxu0 0
    %163 = vmatprep.subr.bf16.mxu0 0
    %164 = vmatpush1.bf16.msra.mxu0 0
    %165 = vmatprep.subr.bf16.mxu0 0
    %166 = vmatpush1.bf16.msra.mxu0 0
    %167 = vmatprep.subr.bf16.mxu0 0
    %168 = vmatpush1.bf16.msra.mxu0 0
    %169 = vmatprep.subr.bf16.mxu0 0
    %170 = vmatpush1.bf16.msra.mxu0 0
    %171 = vmatprep.subr.bf16.mxu0 0
    %172 = vmatpush1.bf16.msra.mxu0 0
    %173 = vmatprep.mubr.bf16.mxu0 0
    %174 = vmatmul.mubr.bf16.gmra.mrb[0].mxu0 %v70
    %v175 = vpop.f32.mrb[0].mxu0
    %v176 = vadd.f32 %v92, %v175
    %v177 = vpop.f32.mrb[0].mxu0
    %v178 = vpop.f32.mrb[0].mxu0
    %v179 = vpop.f32.mrb[0].mxu0
    %180 = vdwg.mxu0
    %v181 = vmax.f32 %v176, 0.0
    %v182 = vpack.c.bf16 %v181, %v181
    %v183 = vld [vmem:[#allocation5] sm:$0xf]
    %v184 = vld [vmem:[#allocation5 + $0x4] sm:$0xf]
    %v185 = vld [vmem:[#allocation5 + $0x8] sm:$0xf]
    %v186 = vld [vmem:[#allocation5 + $0xc] sm:$0xf]
    %v187 = vld [vmem:[#allocation5 + $0x10] sm:$0xf]
    %v188 = vld [vmem:[#allocation5 + $0x14] sm:$0xf]
    %v189 = vld [vmem:[#allocation5 + $0x18] sm:$0xf]
    %v190 = vld [vmem:[#allocation5 + $0x1c] sm:$0xf]
    %v191 = vld [vmem:[#allocation5 + $0x20] sm:$0xf]
    %v192 = vld [vmem:[#allocation5 + $0x24] sm:$0xf]
    %v193 = vld [vmem:[#allocation5 + $0x28] sm:$0xf]
    %v194 = vld [vmem:[#allocation5 + $0x2c] sm:$0xf]
    %v195 = vld [vmem:[#allocation5 + $0x30] sm:$0xf]
    %v196 = vld [vmem:[#allocation5 + $0x34] sm:$0xf]
    %v197 = vld [vmem:[#allocation5 + $0x38] sm:$0xf]
    %v198 = vld [vmem:[#allocation5 + $0x3c] sm:$0xf]
    %v199 = vld [vmem:[%s4] sm:$0x1]
    %v200 = vunpack.c.l.bf16 %v199
    %v201 = vlaneseq
    %v202 = vshrl.u32 %v201, 7
    %v203 = vsub.s32 0, %v202
    %v204 = vrot.slane %v200, %v203
    %v221 = vunpack.c.l.b16 %v183
    %v222 = vunpack.c.l.b16 %v184
    %v223 = vunpack.c.l.b16 %v185
    %v224 = vunpack.c.l.b16 %v186
    %v225 = vunpack.c.l.b16 %v187
    %v226 = vunpack.c.l.b16 %v188
    %v227 = vunpack.c.l.b16 %v189
    %v228 = vunpack.c.l.b16 %v190
    %v229 = vunpack.c.l.b16 %v191
    %v230 = vunpack.c.l.b16 %v192
    %v231 = vunpack.c.l.b16 %v193
    %v232 = vunpack.c.l.b16 %v194
    %v233 = vunpack.c.l.b16 %v195
    %v234 = vunpack.c.l.b16 %v196
    %v235 = vunpack.c.l.b16 %v197
    %v236 = vunpack.c.l.b16 %v198
    %v237 = vpack.c.b16 %v222, %v221
    %v238 = vpack.c.b16 %v224, %v223
    %v239 = vpack.c.b16 %v226, %v225
    %v240 = vpack.c.b16 %v228, %v227
    %v241 = vpack.c.b16 %v230, %v229
    %v242 = vpack.c.b16 %v232, %v231
    %v243 = vpack.c.b16 %v234, %v233
    %v244 = vpack.c.b16 %v236, %v235
    %253 = vmatprep.subr.bf16.mxu0 0
    %254 = vmatpush1.bf16.msra.mxu0 %v237
    %255 = vmatprep.subr.bf16.mxu0 0
    %256 = vmatpush1.bf16.msra.mxu0 %v238
    %257 = vmatprep.subr.bf16.mxu0 0
    %258 = vmatpush1.bf16.msra.mxu0 %v239
    %259 = vmatprep.subr.bf16.mxu0 0
    %260 = vmatpush1.bf16.msra.mxu0 %v240
    %261 = vmatprep.subr.bf16.mxu0 0
    %262 = vmatpush1.bf16.msra.mxu0 %v241
    %263 = vmatprep.subr.bf16.mxu0 0
    %264 = vmatpush1.bf16.msra.mxu0 %v242
    %265 = vmatprep.subr.bf16.mxu0 0
    %266 = vmatpush1.bf16.msra.mxu0 %v243
    %267 = vmatprep.subr.bf16.mxu0 0
    %268 = vmatpush1.bf16.msra.mxu0 %v244
    %269 = vmatprep.subr.bf16.mxu0 0
    %270 = vmatpush1.bf16.msra.mxu0 0
    %271 = vmatprep.subr.bf16.mxu0 0
    %272 = vmatpush1.bf16.msra.mxu0 0
    %273 = vmatprep.subr.bf16.mxu0 0
    %274 = vmatpush1.bf16.msra.mxu0 0
    %275 = vmatprep.subr.bf16.mxu0 0
    %276 = vmatpush1.bf16.msra.mxu0 0
    %277 = vmatprep.subr.bf16.mxu0 0
    %278 = vmatpush1.bf16.msra.mxu0 0
    %279 = vmatprep.subr.bf16.mxu0 0
    %280 = vmatpush1.bf16.msra.mxu0 0
    %281 = vmatprep.subr.bf16.mxu0 0
    %282 = vmatpush1.bf16.msra.mxu0 0
    %283 = vmatprep.subr.bf16.mxu0 0
    %284 = vmatpush1.bf16.msra.mxu0 0
    %285 = vmatprep.mubr.bf16.mxu0 0
    %286 = vmatmul.mubr.bf16.gmra.mrb[0].mxu0 %v182
    %v287 = vpop.f32.mrb[0].mxu0
    %v288 = vadd.f32 %v204, %v287
    %v289 = vpop.f32.mrb[0].mxu0
    %v290 = vpop.f32.mrb[0].mxu0
    %v291 = vpop.f32.mrb[0].mxu0
    %292 = vdwg.mxu0
    %v293 = vmax.f32 %v288, 0.0
    %v294 = vpack.c.bf16 %v293, %v293
    %v295 = vld [vmem:[#allocation7] sm:$0xf]
    %v296 = vld [vmem:[#allocation7 + $0x4] sm:$0xf]
    %v297 = vld [vmem:[#allocation7 + $0x8] sm:$0xf]
    %v298 = vld [vmem:[#allocation7 + $0xc] sm:$0xf]
    %v299 = vld [vmem:[#allocation7 + $0x10] sm:$0xf]
    %v300 = vld [vmem:[#allocation7 + $0x14] sm:$0xf]
    %v301 = vld [vmem:[#allocation7 + $0x18] sm:$0xf]
    %v302 = vld [vmem:[#allocation7 + $0x1c] sm:$0xf]
    %v303 = vld [vmem:[#allocation7 + $0x20] sm:$0xf]
    %v304 = vld [vmem:[#allocation7 + $0x24] sm:$0xf]
    %v305 = vld [vmem:[#allocation7 + $0x28] sm:$0xf]
    %v306 = vld [vmem:[#allocation7 + $0x2c] sm:$0xf]
    %v307 = vld [vmem:[#allocation7 + $0x30] sm:$0xf]
    %v308 = vld [vmem:[#allocation7 + $0x34] sm:$0xf]
    %v309 = vld [vmem:[#allocation7 + $0x38] sm:$0xf]
    %v310 = vld [vmem:[#allocation7 + $0x3c] sm:$0xf]
    %v311 = vld [vmem:[%s6] sm:$0x1]
    %v312 = vunpack.c.l.bf16 %v311
    %v313 = vlaneseq
    %v314 = vshrl.u32 %v313, 7
    %v315 = vsub.s32 0, %v314
    %v316 = vrot.slane %v312, %v315
    %v333 = vunpack.c.l.b16 %v295
    %v334 = vunpack.c.l.b16 %v296
    %v335 = vunpack.c.l.b16 %v297
    %v336 = vunpack.c.l.b16 %v298
    %v337 = vunpack.c.l.b16 %v299
    %v338 = vunpack.c.l.b16 %v300
    %v339 = vunpack.c.l.b16 %v301
    %v340 = vunpack.c.l.b16 %v302
    %v341 = vunpack.c.l.b16 %v303
    %v342 = vunpack.c.l.b16 %v304
    %v343 = vunpack.c.l.b16 %v305
    %v344 = vunpack.c.l.b16 %v306
    %v345 = vunpack.c.l.b16 %v307
    %v346 = vunpack.c.l.b16 %v308
    %v347 = vunpack.c.l.b16 %v309
    %v348 = vunpack.c.l.b16 %v310
    %v349 = vpack.c.b16 %v334, %v333
    %v350 = vpack.c.b16 %v336, %v335
    %v351 = vpack.c.b16 %v338, %v337
    %v352 = vpack.c.b16 %v340, %v339
    %v353 = vpack.c.b16 %v342, %v341
    %v354 = vpack.c.b16 %v344, %v343
    %v355 = vpack.c.b16 %v346, %v345
    %v356 = vpack.c.b16 %v348, %v347
    %365 = vmatprep.subr.bf16.mxu0 0
    %366 = vmatpush1.bf16.msra.mxu0 %v349
    %367 = vmatprep.subr.bf16.mxu0 0
    %368 = vmatpush1.bf16.msra.mxu0 %v350
    %369 = vmatprep.subr.bf16.mxu0 0
    %370 = vmatpush1.bf16.msra.mxu0 %v351
    %371 = vmatprep.subr.bf16.mxu0 0
    %372 = vmatpush1.bf16.msra.mxu0 %v352
    %373 = vmatprep.subr.bf16.mxu0 0
    %374 = vmatpush1.bf16.msra.mxu0 %v353
    %375 = vmatprep.subr.bf16.mxu0 0
    %376 = vmatpush1.bf16.msra.mxu0 %v354
    %377 = vmatprep.subr.bf16.mxu0 0
    %378 = vmatpush1.bf16.msra.mxu0 %v355
    %379 = vmatprep.subr.bf16.mxu0 0
    %380 = vmatpush1.bf16.msra.mxu0 %v356
    %381 = vmatprep.subr.bf16.mxu0 0
    %382 = vmatpush1.bf16.msra.mxu0 0
    %383 = vmatprep.subr.bf16.mxu0 0
    %384 = vmatpush1.bf16.msra.mxu0 0
    %385 = vmatprep.subr.bf16.mxu0 0
    %386 = vmatpush1.bf16.msra.mxu0 0
    %387 = vmatprep.subr.bf16.mxu0 0
    %388 = vmatpush1.bf16.msra.mxu0 0
    %389 = vmatprep.subr.bf16.mxu0 0
    %390 = vmatpush1.bf16.msra.mxu0 0
    %391 = vmatprep.subr.bf16.mxu0 0
    %392 = vmatpush1.bf16.msra.mxu0 0
    %393 = vmatprep.subr.bf16.mxu0 0
    %394 = vmatpush1.bf16.msra.mxu0 0
    %395 = vmatprep.subr.bf16.mxu0 0
    %396 = vmatpush1.bf16.msra.mxu0 0
    %397 = vmatprep.mubr.bf16.mxu0 0
    %398 = vmatmul.mubr.bf16.gmra.mrb[0].mxu0 %v294
    %v399 = vpop.f32.mrb[0].mxu0
    %v400 = vadd.f32 %v316, %v399
    %v401 = vpop.f32.mrb[0].mxu0
    %v402 = vpop.f32.mrb[0].mxu0
    %v403 = vpop.f32.mrb[0].mxu0
    %404 = vdwg.mxu0
    %v405 = vmax.f32 %v400, 0.0
    %406 = vst [vmem:[#allocation8] sm:$0xff] %v405
    // Predicated region
    $region42: #{dense_forward.1} parent=1 // pred_check
      _
    $region43: #{dense_forward.1} parent=1 // pred_check_branch
      %408 = sbr.rel (0) target = $region45
    $region44: #{dense_forward.1} parent=1 // pred_region
      %s410 = ssub.s32 128, 128
      %411 = vsyncadd [#allocation4], %s410
      %s413 = sshll.u32 [#allocation8], 4
      %s414 = int_to_ptr.vmem [resolvable:$true] %s413
      %416 = dma.vmem_to_hbm [thread:$0]  %s414, 128, %s7, [#allocation4]
    $region45: #{dense_forward.1} parent=1 // pred_fallthru
      _
    // Predicated region
    $region46: #{dense_forward.1} parent=1 // pred_check
      _
    $region47: #{dense_forward.1} parent=1 // pred_check_branch
      %418 = sbr.rel (0) target = $region49
    $region48: #{dense_forward.1} parent=1 // pred_region
      %419 = dma.done [#allocation4], 128
    $region49: #{dense_forward.1} parent=1 // pred_fallthru
      _
    %420 = vsyncpa [#allocation3], 1
    %421 = vsyncpa [#allocation6], 1
    %422 = vsyncpa [#allocation4], 1

</llo_original>
